<compile_context>
chip_gen: v6e
topology: v6e:2x2x1
jax: 0.10.0
libtpu: 0.0.40
codegen_flags: <defaults>
</compile_context>

<pallas_src>
import numpy as np
import jax
import jax.numpy as jnp
from jax.experimental import pallas as pl
from jax.experimental.pallas import tpu as pltpu


# -----------------------------------------------------------------------------
# helpers
# -----------------------------------------------------------------------------

def _pad128(n):
    return int(np.ceil(n / 128.0) * 128)


def _full_spec(shape):
    """Whole-array block that stays resident across the grid (constant index)."""
    return pl.BlockSpec(shape, lambda *_: (0,) * len(shape))


# -----------------------------------------------------------------------------
# row-tiled linear:  y = x @ w_t + b   (w_t pre-transposed (K, N), b (1, N))
# -----------------------------------------------------------------------------

def _linear_kernel(x_ref, w_ref, b_ref, o_ref):
    o_ref[...] = (jnp.dot(x_ref[...].astype(w_ref.dtype), w_ref[...],
                          preferred_element_type=jnp.float32)
                  + b_ref[...]).astype(o_ref.dtype)


def linear(x, w_t, b_row, out_dtype=jnp.float32):
    M, K = x.shape
    N = w_t.shape[1]
    tm = None
    for cand in (1024, 512, 256, 128):
        if M % cand == 0:
            tm = cand
            break
    if tm is None:
        if M <= 1024:
            tm = M                                  # single block == full dim
        else:                                       # pad rows to a 128 multiple
            pad = (-M) % 128
            xp = jnp.pad(x, ((0, pad), (0, 0)))
            return linear(xp, w_t, b_row, out_dtype)[:M]
    return pl.pallas_call(
        _linear_kernel,
        out_shape=jax.ShapeDtypeStruct((M, N), out_dtype),
        grid_spec=pltpu.PrefetchScalarGridSpec(
            num_scalar_prefetch=0,
            grid=(M // tm,),
            in_specs=[pl.BlockSpec((tm, K), lambda i: (i, 0)),
                      pl.BlockSpec((K, N), lambda i: (0, 0)),
                      pl.BlockSpec((1, N), lambda i: (0, 0))],
            out_specs=pl.BlockSpec((tm, N), lambda i: (i, 0))),
        compiler_params=pltpu.CompilerParams(
            dimension_semantics=("parallel",)),
    )(x, w_t, b_row)


# -----------------------------------------------------------------------------
# 3x3 conv (stride 1, pad 1) as ONE im2col matmul (PVANet stand-in)
# -----------------------------------------------------------------------------

def conv3x3(x_nchw, w_mat, b_row):
    """3x3 conv, stride 1, pad 1.  x:(B,C,H,W) -> (B,H,W,O) f32 (NHWC)."""
    B, C, H, W = x_nchw.shape
    O = w_mat.shape[1]
    xp = jnp.pad(x_nchw.transpose(0, 2, 3, 1), ((0, 0), (1, 1), (1, 1), (0, 0)))
    # (B, H, W, 9, C) patches, tap-major / channel-minor to match w_mat rows.
    taps = [xp[:, dh:dh + H, dw:dw + W, :] for dh in range(3) for dw in range(3)]
    patches = jnp.stack(taps, axis=3).reshape(B * H * W, 9 * C)
    out = linear(patches, w_mat, b_row)                      # (B*H*W, O) f32
    return out.reshape(B, H, W, O)


# -----------------------------------------------------------------------------
# fused decoder: one grid-over-time kernel, state resident in VMEM scratch
# -----------------------------------------------------------------------------

def _decoder_kernel(lens_ref, col_ref, att1_ref, enc_ref, emb_tab_ref,
                    init_emb_ref, init_s_ref,
                    g1_wrz, g1_brz, g1_wnx, g1_bnx, g1_wnh, g1_bnh,
                    g2_wrz, g2_brz, g2_wnx, g2_bnx, g2_wnh, g2_bnh,
                    datt_w, datt_b, cvg_w, cvg_b, full_w, full_b, fc_w, fc_b,
                    preds_ref, alpha_ref,
                    s_scr, emb_scr, cvg_scr):
    t = pl.program_id(0)

    @pl.when(t == 0)
    def _():
        s_scr[...] = init_s_ref[...]
        emb_scr[...] = init_emb_ref[...]
        cvg_scr[...] = jnp.zeros_like(cvg_scr)

    s_prev = s_scr[...]            # (B, Dp)
    emb_prev = emb_scr[...]        # (B, Ep)
    cv = cvg_scr[...]              # (B, P)
    active = lens_ref[...] > t     # (B, 1) rows still decoding (= torch [:bt])

    def gru(x, h, w_rz, b_rz, wn_x, bn_x, wn_h, bn_h):
        # PyTorch GRUCell (gate order r, z, n).  r/z gates fused into one dot on
        # the concatenated [x, h]; padded gate columns stay 0 -> padded hidden
        # dims stay exactly 0 across steps.
        hp = wn_h.shape[1]
        xh = jnp.concatenate([x, h], axis=-1).astype(jnp.bfloat16)
        rz = jnp.dot(xh, w_rz[...], preferred_element_type=jnp.float32) + b_rz[...]
        r = jax.nn.sigmoid(rz[:, :hp])
        z = jax.nn.sigmoid(rz[:, hp:])
        gi_n = jnp.dot(x.astype(jnp.bfloat16), wn_x[...],
                       preferred_element_type=jnp.float32) + bn_x[...]
        gh_n = jnp.dot(h.astype(jnp.bfloat16), wn_h[...],
                       preferred_element_type=jnp.float32) + bn_h[...]
        n = jnp.tanh(gi_n + r * gh_n)
        return (1.0 - z) * n + z * h

    # st_hat = gru1(embedding_word, s)
    st_hat = gru(emb_prev, s_prev, g1_wrz, g1_brz, g1_wnx, g1_bnx, g1_wnh, g1_bnh)

    # attention(encoder_out, s, converge_vector); att1 precomputed (hoisted),
    # the two converge projections are folded into one (P, A) weight.
    att2 = jnp.dot(s_prev.astype(jnp.bfloat16), datt_w[...],
                   preferred_element_type=jnp.float32) + datt_b[...]
    att3 = jnp.dot(cv.astype(jnp.bfloat16), cvg_w[...],
                   preferred_element_type=jnp.float32) + cvg_b[...]
    # torch skips the converge branch at t == 0 (converge_vector == 0); here the
    # (cheap) dot is computed anyway and gated out -- numerically identical.
    gate = (t > 0).astype(jnp.float32)
    att23 = att2 + gate * att3                                   # (B, Ap)

    e = jnp.tanh(att1_ref[...] + att23[:, None, :])              # (B, P, Ap)
    # P is tiny (f*f); at production sizes this reduce should also be an MXU dot.
    scores = jnp.sum(e * full_w[...], axis=-1) + full_b[...]     # (B, P)
    m = jnp.max(scores, axis=-1, keepdims=True)
    p = jnp.exp(scores - m)
    alpha = p / jnp.sum(p, axis=-1, keepdims=True)               # softmax(dim=1)

    # context = sum_p alpha[b,p] * enc[b,p,:]  as a batched MXU contraction
    ctx = jnp.einsum('bqp,bpe->bqe', alpha.astype(jnp.bfloat16)[:, None, :],
                     enc_ref[...], preferred_element_type=jnp.float32)[:, 0, :]

    # st = gru2(context, st_hat)
    st = gru(ctx, st_hat, g2_wrz, g2_brz, g2_wnx, g2_bnx, g2_wnh, g2_bnh)

    # fc head: vocab padded to 128 lanes, padded columns carry -1e30 in the bias
    # so no runtime vocab masking is needed for the argmax.
    preds = jnp.dot(st.astype(jnp.bfloat16), fc_w[...],
                    preferred_element_type=jnp.float32) + fc_b[...]   # (B, Vpad)

    # first-max argmax (== torch preds.topk(1)[1]) using the resident index row
    col = col_ref[...]                                            # (1, Vpad) i32
    pm = jnp.max(preds, axis=-1, keepdims=True)
    best = jnp.min(jnp.where(preds == pm, col, col.shape[1]),
                   axis=-1, keepdims=True)                        # (B, 1)
    onehot = (col == best).astype(jnp.bfloat16)                   # (B, Vpad)
    # TODO(synk): at production vocab sizes replace this one-hot matmul with a
    # dynamic row gather from the embedding table.
    new_emb = jnp.dot(onehot, emb_tab_ref[...],
                      preferred_element_type=jnp.float32)         # (B, Ep)

    # masked state update: rows with length <= t keep their state, and the
    # corresponding output rows stay zero (matches torch's [:batch_size_t]).
    s_scr[...] = jnp.where(active, st, s_prev)
    emb_scr[...] = jnp.where(active, new_emb, emb_prev)
    cvg_scr[...] = jnp.where(active, cv + alpha, cv)

    preds_ref[0] = jnp.where(active, preds, 0.0)
    alpha_ref[0] = jnp.where(active, alpha, 0.0)


def run_decoder(prm, att1, encoder_out, lens_col, init_emb, init_s, max_t):
    B, P, _ = att1.shape
    Dp = init_s.shape[-1]
    Ep = init_emb.shape[-1]
    Vpad = prm['fc_w_t'].shape[1]
    vocab = prm['vocab_size']
    col_row = jnp.arange(Vpad, dtype=jnp.int32).reshape(1, Vpad)

    inputs = (lens_col, col_row, att1, encoder_out, prm['emb_tab'],
              init_emb, init_s,
              prm['gru1_wrz'], prm['gru1_brz'], prm['gru1_wnx'], prm['gru1_bnx'],
              prm['gru1_wnh'], prm['gru1_bnh'],
              prm['gru2_wrz'], prm['gru2_brz'], prm['gru2_wnx'], prm['gru2_bnx'],
              prm['gru2_wnh'], prm['gru2_bnh'],
              prm['dec_att_w_t'], prm['dec_att_b'],
              prm['cvg_w_t'], prm['cvg_b'],
              prm['full_w'], prm['full_b'],
              prm['fc_w_t'], prm['fc_b'])

    # TODO(synk): on v7x a leading 'parallel' batch-block grid axis would use
    # both TensorCores; skipped at toy batch size.
    preds_all, alphas_all = pl.pallas_call(
        _decoder_kernel,
        out_shape=(jax.ShapeDtypeStruct((max_t, B, Vpad), jnp.float32),
                   jax.ShapeDtypeStruct((max_t, B, P), jnp.float32)),
        grid_spec=pltpu.PrefetchScalarGridSpec(
            num_scalar_prefetch=0,
            grid=(max_t,),
            in_specs=[_full_spec(x.shape) for x in inputs],
            out_specs=[pl.BlockSpec((1, B, Vpad), lambda t: (t, 0, 0)),
                       pl.BlockSpec((1, B, P), lambda t: (t, 0, 0))],
            scratch_shapes=[pltpu.VMEM((B, Dp), jnp.float32),
                            pltpu.VMEM((B, Ep), jnp.float32),
                            pltpu.VMEM((B, P), jnp.float32)]),
        compiler_params=pltpu.CompilerParams(
            dimension_semantics=("arbitrary",),
            vmem_limit_bytes=48 * 1024 * 1024),
    )(*inputs)

    predictions = jnp.transpose(preds_all, (1, 0, 2))[:, :, :vocab]
    alphas = jnp.transpose(alphas_all, (1, 0, 2))
    return predictions, alphas


# -----------------------------------------------------------------------------
# parameters (pre-transposed / lane-padded / bf16 ONCE, kernel-friendly layouts)
# -----------------------------------------------------------------------------

def init_params(key, img_channels, vocab_size, encoder_dim, encoder_fsize,
                embed_dim, decoder_dim, attention_dim, converge_vector_dim):
    keys = jax.random.split(key, 12)
    P = encoder_fsize * encoder_fsize
    Dp = _pad128(decoder_dim)
    Ap = _pad128(attention_dim)
    Ep = _pad128(embed_dim)
    Vp = _pad128(vocab_size)

    def lin_w(k, in_d, out_d):
        # Model.init_weight: Linear weight ~ N(0, 0.01), bias = 0
        return 0.01 * jax.random.normal(k, (out_d, in_d), jnp.float32)

    def lin_pad(k, in_d, out_d, in_pad, out_pad, dtype=jnp.bfloat16):
        w = lin_w(k, in_d, out_d)
        wt = jnp.zeros((in_pad, out_pad), jnp.float32).at[:in_d, :out_d].set(w.T)
        return wt.astype(dtype), jnp.zeros((1, out_pad), jnp.float32)

    def gru_fused(k, in_d, hid, in_pad, hp):
        # default PyTorch GRUCell init, repacked as fused lane-padded tiles:
        #   w_rz : ([x;h] -> [r;z])  (in_pad+hp, 2*hp)   bf16
        #   wn_x / wn_h : n-gate     (in_pad, hp)/(hp, hp) bf16
        kk = jax.random.split(k, 4)
        bound = 1.0 / np.sqrt(hid)
        wih = jax.random.uniform(kk[0], (3 * hid, in_d), jnp.float32, -bound, bound)
        whh = jax.random.uniform(kk[1], (3 * hid, hid), jnp.float32, -bound, bound)
        bih = jax.random.uniform(kk[2], (3 * hid,), jnp.float32, -bound, bound)
        bhh = jax.random.uniform(kk[3], (3 * hid,), jnp.float32, -bound, bound)
        wr_x, wz_x, wn_x = wih[:hid], wih[hid:2 * hid], wih[2 * hid:]
        wr_h, wz_h, wn_h = whh[:hid], whh[hid:2 * hid], whh[2 * hid:]
        w_rz = (jnp.zeros((in_pad + hp, 2 * hp), jnp.float32)
                .at[:in_d, :hid].set(wr_x.T)
                .at[:in_d, hp:hp + hid].set(wz_x.T)
                .at[in_pad:in_pad + hid, :hid].set(wr_h.T)
                .at[in_pad:in_pad + hid, hp:hp + hid].set(wz_h.T))
        b_rz = (jnp.zeros((1, 2 * hp), jnp.float32)
                .at[0, :hid].set(bih[:hid] + bhh[:hid])
                .at[0, hp:hp + hid].set(bih[hid:2 * hid] + bhh[hid:2 * hid]))
        wnx = jnp.zeros((in_pad, hp), jnp.float32).at[:in_d, :hid].set(wn_x.T)
        bnx = jnp.zeros((1, hp), jnp.float32).at[0, :hid].set(bih[2 * hid:])
        wnh = jnp.zeros((hp, hp), jnp.float32).at[:hid, :hid].set(wn_h.T)
        bnh = jnp.zeros((1, hp), jnp.float32).at[0, :hid].set(bhh[2 * hid:])
        return (w_rz.astype(jnp.bfloat16), b_rz, wnx.astype(jnp.bfloat16), bnx,
                wnh.astype(jnp.bfloat16), bnh)

    p = {'vocab_size': vocab_size}

    # encoder conv (PVANet stand-in): xavier_normal weight, zero bias, stored as
    # a single im2col weight matrix (9*C, O) in bf16.
    fan_in, fan_out = img_channels * 9, encoder_dim * 9
    std = np.sqrt(2.0 / (fan_in + fan_out))
    conv_w = std * jax.random.normal(
        keys[0], (encoder_dim, img_channels, 3, 3), jnp.float32)
    p['conv_w'] = conv_w.transpose(2, 3, 1, 0).reshape(
        9 * img_channels, encoder_dim).astype(jnp.bfloat16)
    p['conv_b'] = jnp.zeros((1, encoder_dim), jnp.float32)

    # embedding: uniform(-0.1, 0.1), zero-padded to (Vp, Ep), bf16 resident
    emb = jax.random.uniform(keys[1], (vocab_size, embed_dim), jnp.float32, -0.1, 0.1)
    p['emb_tab'] = (jnp.zeros((Vp, Ep), jnp.float32)
                    .at[:vocab_size, :embed_dim].set(emb)).astype(jnp.bfloat16)

    # hoisted encoder-side linears (bf16 MXU operands, f32 accumulate)
    p['enc_att_w_t'], p['enc_att_b'] = lin_pad(keys[2], encoder_dim, attention_dim,
                                               encoder_dim, Ap)
    p['s_w_t'], p['s_b'] = lin_pad(keys[3], encoder_dim, decoder_dim,
                                   encoder_dim, Dp)

    # decoder attention; the two converge linears are folded into one (P, A)
    # weight (both biases are zero by Model.init_weight, so the folded bias is 0)
    p['dec_att_w_t'], p['dec_att_b'] = lin_pad(keys[4], decoder_dim, attention_dim,
                                               Dp, Ap)
    wc = lin_w(keys[5], P, converge_vector_dim)                  # (Cv, P)
    wa = lin_w(keys[6], converge_vector_dim, attention_dim)      # (A, Cv)
    w_comb = (wa @ wc).T                                         # (P, A)
    p['cvg_w_t'] = (jnp.zeros((P, Ap), jnp.float32)
                    .at[:, :attention_dim].set(w_comb)).astype(jnp.bfloat16)
    p['cvg_b'] = jnp.zeros((1, Ap), jnp.float32)

    w_full = lin_w(keys[7], attention_dim, 1)                    # (1, A)
    p['full_w'] = (jnp.zeros((1, 1, Ap), jnp.float32)
                   .at[0, 0, :attention_dim].set(w_full[0]))
    p['full_b'] = jnp.zeros((1, 1), jnp.float32)

    # fc head: padded vocab columns get -1e30 baked into the bias
    w_fc = lin_w(keys[8], decoder_dim, vocab_size)               # (V, D)
    p['fc_w_t'] = (jnp.zeros((Dp, Vp), jnp.float32)
                   .at[:decoder_dim, :vocab_size].set(w_fc.T)).astype(jnp.bfloat16)
    p['fc_b'] = jnp.full((1, Vp), -1e30, jnp.float32).at[0, :vocab_size].set(0.0)

    (p['gru1_wrz'], p['gru1_brz'], p['gru1_wnx'], p['gru1_bnx'],
     p['gru1_wnh'], p['gru1_bnh']) = gru_fused(keys[9], embed_dim, decoder_dim,
                                               Ep, Dp)
    (p['gru2_wrz'], p['gru2_brz'], p['gru2_wnx'], p['gru2_bnx'],
     p['gru2_wnh'], p['gru2_bnh']) = gru_fused(keys[10], encoder_dim, decoder_dim,
                                               encoder_dim, Dp)
    return p


# -----------------------------------------------------------------------------
# Model forward
# -----------------------------------------------------------------------------

def model_forward(params, images, encoded_captions, caption_lengths, cfg):
    B = images.shape[0]
    f = cfg['encoder_fsize']
    E = cfg['encoder_dim']

    # ---- Encoder ----
    # TODO(synk): PVANet backbone is not defined in the reference source; a
    # single 3x3 conv (im2col Pallas matmul) stands in for it.
    feat = conv3x3(images, params['conv_w'], params['conv_b'])   # (B,H,W,E)
    H, W = feat.shape[1], feat.shape[2]
    # TODO(synk): adaptive average pool assumes H, W divisible by encoder_fsize.
    feat = feat.reshape(B, f, H // f, f, W // f, E).mean(axis=(2, 4))
    encoder_out = feat.reshape(B, f * f, E)                      # (B,P,E)
    P = f * f

    # ---- sort by caption length (device-side, descending) ----
    caption_lengths = jnp.asarray(caption_lengths).astype(jnp.int32).reshape(B)
    sort_ind = jnp.argsort(-caption_lengths)
    sorted_lens = caption_lengths[sort_ind]
    encoder_out = encoder_out[sort_ind]
    encoded_captions = jnp.asarray(encoded_captions)[sort_ind]

    # No host sync: the static caption length bounds the time grid; per-row
    # lengths mask the tail timesteps (torch sizes outputs to max(lengths)).
    max_t = int(encoded_captions.shape[1])
    decode_lengths = sorted_lens                                 # device array

    # ---- loop-invariant work, hoisted out of the time loop ----
    Ap = params['enc_att_w_t'].shape[1]
    att1 = linear(encoder_out.reshape(B * P, E),
                  params['enc_att_w_t'], params['enc_att_b'],
                  out_dtype=jnp.bfloat16).reshape(B, P, Ap)
    init_s = linear(encoder_out.mean(axis=1), params['s_w_t'], params['s_b'])
    start_word = encoded_captions[:, 0]
    init_emb = params['emb_tab'][start_word].astype(jnp.float32)  # (B, Ep)
    # TODO(synk): nn.Dropout / embedding dropout treated as identity (eval mode).

    # ---- fused grid-over-time decoder ----
    lens_col = sorted_lens.reshape(B, 1)
    predictions, alphas = run_decoder(params, att1,
                                      encoder_out.astype(jnp.bfloat16),
                                      lens_col, init_emb, init_s, max_t)

    return predictions, encoded_captions, decode_lengths, alphas, sort_ind


# -----------------------------------------------------------------------------
# main
# -----------------------------------------------------------------------------

if __name__ == "__main__":
    cfg = dict(img_channels=4, vocab_size=50, encoder_dim=128, encoder_fsize=4,
               embed_dim=32, decoder_dim=32, attention_dim=32,
               converge_vector_dim=32)
    key = jax.random.PRNGKey(0)
    kp, ki, kc = jax.random.split(key, 3)
    params = init_params(kp, **cfg)

    B, Himg, Wimg = 2, 16, 16
    images = jax.random.normal(ki, (B, cfg['img_channels'], Himg, Wimg), jnp.float32)
    max_len = 5
    encoded_captions = jax.random.randint(kc, (B, max_len), 0, cfg['vocab_size'])
    caption_lengths = jnp.array([4, 5], dtype=jnp.int32)

    preds, caps, dec_lens, alphas, sort_ind = model_forward(
        params, images, encoded_captions, caption_lengths, cfg)
    jax.block_until_ready(preds)
    jax.block_until_ready(alphas)

    assert preds.shape == (B, max_len, cfg['vocab_size'])
    assert alphas.shape == (B, max_len, cfg['encoder_fsize'] ** 2)
    assert caps.shape == (B, max_len)
    assert int(jnp.max(dec_lens)) == max_len
    assert bool(jnp.all(jnp.isfinite(preds)))
    print("KERNEL_OK")
</pallas_src>

<mosaic_0001>
module attributes {stable_mosaic.version = 11 : i64} {
  func.func @_linear_kernel(%arg0: i32, %arg1: memref<512x36xf32, #tpu.memory_space<vmem>>, %arg2: memref<36x128xbf16, #tpu.memory_space<vmem>>, %arg3: memref<1x128xf32, #tpu.memory_space<vmem>>, %arg4: memref<512x128xf32, #tpu.memory_space<vmem>>) attributes {dimension_semantics = [#tpu.dimension_semantics<parallel>], iteration_bounds = array<i64: 1>, scalar_prefetch = 0 : i64, scratch_operands = 0 : i64, tpu.core_type = #tpu.core_type<tc>, window_params = [{transform_indices = @transform_0, window_bounds = array<i64: 512, 36>}, {pipeline_mode = #tpu.pipeline_mode<synchronous>, transform_indices = @transform_1, window_bounds = array<i64: 36, 128>}, {pipeline_mode = #tpu.pipeline_mode<synchronous>, transform_indices = @transform_2, window_bounds = array<i64: 1, 128>}, {transform_indices = @transform_3, window_bounds = array<i64: 512, 128>}]} {
    %c0 = arith.constant 0 : index
    %c0_0 = arith.constant 0 : index
    %0 = vector.load %arg1[%c0, %c0_0] : memref<512x36xf32, #tpu.memory_space<vmem>>, vector<512x36xf32>
    %1 = arith.truncf %0 : vector<512x36xf32> to vector<512x36xbf16>
    %c0_1 = arith.constant 0 : index
    %c0_2 = arith.constant 0 : index
    %2 = vector.load %arg2[%c0_1, %c0_2] : memref<36x128xbf16, #tpu.memory_space<vmem>>, vector<36x128xbf16>
    %cst = arith.constant dense<0.000000e+00> : vector<512x128xf32>
    %3 = tpu.matmul %1, %2, %cst {dimension_numbers = #tpu.dot_dimension_numbers<[1], [0], [0], [1], [0, 0, 1, 1], [], []>} : vector<512x36xbf16>, vector<36x128xbf16>, vector<512x128xf32> -> vector<512x128xf32>
    %c0_3 = arith.constant 0 : index
    %c0_4 = arith.constant 0 : index
    %4 = vector.load %arg3[%c0_3, %c0_4] : memref<1x128xf32, #tpu.memory_space<vmem>>, vector<1x128xf32>
    %5 = vector.broadcast %4 : vector<1x128xf32> to vector<512x128xf32>
    %6 = arith.addf %3, %5 : vector<512x128xf32>
    %c0_5 = arith.constant 0 : index
    %c0_6 = arith.constant 0 : index
    %7 = vector.load %arg4[%c0_5, %c0_6] : memref<512x128xf32, #tpu.memory_space<vmem>>, vector<512x128xf32>
    tpu.vector_store %arg4[%c0_5, %c0_6], %6 {strides = array<i32>} : memref<512x128xf32, #tpu.memory_space<vmem>>, vector<512x128xf32>,
    return
  }
  func.func @transform_0(%arg0: i32) -> (i32, i32) {
    %c0_i32 = arith.constant 0 : i32
    %c0_i32_0 = arith.constant 0 : i32
    return %arg0, %c0_i32 : i32, i32
  }
  func.func @transform_1(%arg0: i32) -> (i32, i32) {
    %c0_i32 = arith.constant 0 : i32
    %c0_i32_0 = arith.constant 0 : i32
    %c0_i32_1 = arith.constant 0 : i32
    return %c0_i32, %c0_i32_0 : i32, i32
  }
  func.func @transform_2(%arg0: i32) -> (i32, i32) {
    %c0_i32 = arith.constant 0 : i32
    %c0_i32_0 = arith.constant 0 : i32
    %c0_i32_1 = arith.constant 0 : i32
    return %c0_i32, %c0_i32_0 : i32, i32
  }
  func.func @transform_3(%arg0: i32) -> (i32, i32) {
    %c0_i32 = arith.constant 0 : i32
    %c0_i32_0 = arith.constant 0 : i32
    return %arg0, %c0_i32 : i32, i32
  }
}

</mosaic_0001>

<llo_original>
// kernel: tpu_custom_call.1
$region0: #{tpu_custom_call.1}
  #allocation0 [shape = 'u32[]', space=smem, size = 0x4, offset = 0x4, fixed_abs, tag = 'smem constant byte address 0x4 - core index']
  #allocation1 [shape = 'u32[144,128]{1,0:T(1,128)}', space=vmem, size = 0x12000, scoped, tag = 'internal scratch']
  %s0 = inlined_call_operand.vmem [shape: f32[512,36], index: 0, kind: input, shape index: {}]
  %s1 = inlined_call_operand.vmem [shape: bf16[36,128], index: 1, kind: input, shape index: {}]
  %s2 = inlined_call_operand.vmem [shape: f32[1,128], index: 2, kind: input, shape index: {}]
  %s3 = inlined_call_operand.hbm [shape: f32[512,128], index: 3, kind: output, shape index: {}]
  %s4 = sld [smem:[#allocation0]]
  $region22: #{tpu_custom_call.1} parent=0
    _
  %s6 = ssub.s32 1, %s4
  %s7 = scalar_select 0, %s6, %s4
  $region1: #{tpu_custom_call.1} parent=0
    #allocation2 [shape = 'u8[262144]{0}', space=vmem, size = 0x40000, scoped, tag = 'output window, operand 0, single buffered']
    #allocation3 [shape = 's32[1]{0}', space=sflag, size = 0x4, scoped, tag = 'scoped memory for tpu_custom_call.1']
    %8 = vsyncpa [#allocation3], 0
    // Predicated region
    $region2: #{tpu_custom_call.1} parent=1 // pred_check
      _
    $region3: #{tpu_custom_call.1} parent=1 // pred_check_branch
      %10 = sbr.rel (0) target = $region5
    $region4: #{tpu_custom_call.1} parent=1 // pred_region
      _
    $region5: #{tpu_custom_call.1} parent=1 // pred_fallthru
      _
    // Predicated region
    $region6: #{tpu_custom_call.1} parent=1 // pred_check
      _
    $region7: #{tpu_custom_call.1} parent=1 // pred_check_branch
      %12 = sbr.rel (0) target = $region9
    $region8: #{tpu_custom_call.1} parent=1 // pred_region
      _
    $region9: #{tpu_custom_call.1} parent=1 // pred_fallthru
      _
    // Predicated region
    $region10: #{tpu_custom_call.1} parent=1 // pred_check
      _
    $region11: #{tpu_custom_call.1} parent=1 // pred_check_branch
      %14 = sbr.rel (0) target = $region13
    $region12: #{tpu_custom_call.1} parent=1 // pred_region
      _
    $region13: #{tpu_custom_call.1} parent=1 // pred_fallthru
      _
    %v16 = vld [vmem:[%s0] sm:$0xff]
    %v17 = vld [vmem:[%s0 + $0x8] sm:$0xff]
    %v18 = vld [vmem:[%s0 + $0x10] sm:$0xff]
    %v19 = vld [vmem:[%s0 + $0x18] sm:$0xff]
    %v20 = vld [vmem:[%s0 + $0x20] sm:$0xff]
    %v21 = vld [vmem:[%s0 + $0x28] sm:$0xff]
    %v22 = vld [vmem:[%s0 + $0x30] sm:$0xff]
    %v23 = vld [vmem:[%s0 + $0x38] sm:$0xff]
    %v24 = vld [vmem:[%s0 + $0x40] sm:$0xff]
    %v25 = vld [vmem:[%s0 + $0x48] sm:$0xff]
    %v26 = vld [vmem:[%s0 + $0x50] sm:$0xff]
    %v27 = vld [vmem:[%s0 + $0x58] sm:$0xff]
    %v28 = vld [vmem:[%s0 + $0x60] sm:$0xff]
    %v29 = vld [vmem:[%s0 + $0x68] sm:$0xff]
    %v30 = vld [vmem:[%s0 + $0x70] sm:$0xff]
    %v31 = vld [vmem:[%s0 + $0x78] sm:$0xff]
    %v32 = vld [vmem:[%s0 + $0x80] sm:$0xff]
    %v33 = vld [vmem:[%s0 + $0x88] sm:$0xff]
    %v34 = vld [vmem:[%s0 + $0x90] sm:$0xff]
    %v35 = vld [vmem:[%s0 + $0x98] sm:$0xff]
    %v36 = vld [vmem:[%s0 + $0xa0] sm:$0xff]
    %v37 = vld [vmem:[%s0 + $0xa8] sm:$0xff]
    %v38 = vld [vmem:[%s0 + $0xb0] sm:$0xff]
    %v39 = vld [vmem:[%s0 + $0xb8] sm:$0xff]
    %v40 = vld [vmem:[%s0 + $0xc0] sm:$0xff]
    %v41 = vld [vmem:[%s0 + $0xc8] sm:$0xff]
    %v42 = vld [vmem:[%s0 + $0xd0] sm:$0xff]
    %v43 = vld [vmem:[%s0 + $0xd8] sm:$0xff]
    %v44 = vld [vmem:[%s0 + $0xe0] sm:$0xff]
    %v45 = vld [vmem:[%s0 + $0xe8] sm:$0xff]
    %v46 = vld [vmem:[%s0 + $0xf0] sm:$0xff]
    %v47 = vld [vmem:[%s0 + $0xf8] sm:$0xff]
    %v48 = vld [vmem:[%s0 + $0x100] sm:$0xff]
    %v49 = vld [vmem:[%s0 + $0x108] sm:$0xff]
    %v50 = vld [vmem:[%s0 + $0x110] sm:$0xff]
    %v51 = vld [vmem:[%s0 + $0x118] sm:$0xff]
    %v52 = vld [vmem:[%s0 + $0x120] sm:$0xff]
    %v53 = vld [vmem:[%s0 + $0x128] sm:$0xff]
    %v54 = vld [vmem:[%s0 + $0x130] sm:$0xff]
    %v55 = vld [vmem:[%s0 + $0x138] sm:$0xff]
    %v56 = vld [vmem:[%s0 + $0x140] sm:$0xff]
    %v57 = vld [vmem:[%s0 + $0x148] sm:$0xff]
    %v58 = vld [vmem:[%s0 + $0x150] sm:$0xff]
    %v59 = vld [vmem:[%s0 + $0x158] sm:$0xff]
    %v60 = vld [vmem:[%s0 + $0x160] sm:$0xff]
    %v61 = vld [vmem:[%s0 + $0x168] sm:$0xff]
    %v62 = vld [vmem:[%s0 + $0x170] sm:$0xff]
    %v63 = vld [vmem:[%s0 + $0x178] sm:$0xff]
    %v64 = vld [vmem:[%s0 + $0x180] sm:$0xff]
    %v65 = vld [vmem:[%s0 + $0x188] sm:$0xff]
    %v66 = vld [vmem:[%s0 + $0x190] sm:$0xff]
    %v67 = vld [vmem:[%s0 + $0x198] sm:$0xff]
    %v68 = vld [vmem:[%s0 + $0x1a0] sm:$0xff]
    %v69 = vld [vmem:[%s0 + $0x1a8] sm:$0xff]
    %v70 = vld [vmem:[%s0 + $0x1b0] sm:$0xff]
    %v71 = vld [vmem:[%s0 + $0x1b8] sm:$0xff]
    %v72 = vld [vmem:[%s0 + $0x1c0] sm:$0xff]
    %v73 = vld [vmem:[%s0 + $0x1c8] sm:$0xff]
    %v74 = vld [vmem:[%s0 + $0x1d0] sm:$0xff]
    %v75 = vld [vmem:[%s0 + $0x1d8] sm:$0xff]
    %v76 = vld [vmem:[%s0 + $0x1e0] sm:$0xff]
    %v77 = vld [vmem:[%s0 + $0x1e8] sm:$0xff]
    %v78 = vld [vmem:[%s0 + $0x1f0] sm:$0xff]
    %v79 = vld [vmem:[%s0 + $0x1f8] sm:$0xff]
    %v80 = vpack.c.bf16 %v17, %v16
    %v81 = vpack.c.bf16 %v19, %v18
    %v82 = vpack.c.bf16 %v21, %v20
    %v83 = vpack.c.bf16 %v23, %v22
    %v84 = vpack.c.bf16 %v25, %v24
    %v85 = vpack.c.bf16 %v27, %v26
    %v86 = vpack.c.bf16 %v29, %v28
    %v87 = vpack.c.bf16 %v31, %v30
    %v88 = vpack.c.bf16 %v33, %v32
    %v89 = vpack.c.bf16 %v35, %v34
    %v90 = vpack.c.bf16 %v37, %v36
    %v91 = vpack.c.bf16 %v39, %v38
    %v92 = vpack.c.bf16 %v41, %v40
    %v93 = vpack.c.bf16 %v43, %v42
    %v94 = vpack.c.bf16 %v45, %v44
    %v95 = vpack.c.bf16 %v47, %v46
    %v96 = vpack.c.bf16 %v49, %v48
    %v97 = vpack.c.bf16 %v51, %v50
    %v98 = vpack.c.bf16 %v53, %v52
    %v99 = vpack.c.bf16 %v55, %v54
    %v100 = vpack.c.bf16 %v57, %v56
    %v101 = vpack.c.bf16 %v59, %v58
    %v102 = vpack.c.bf16 %v61, %v60
    %v103 = vpack.c.bf16 %v63, %v62
    %v104 = vpack.c.bf16 %v65, %v64
    %v105 = vpack.c.bf16 %v67, %v66
    %v106 = vpack.c.bf16 %v69, %v68
    %v107 = vpack.c.bf16 %v71, %v70
    %v108 = vpack.c.bf16 %v73, %v72
    %v109 = vpack.c.bf16 %v75, %v74
    %v110 = vpack.c.bf16 %v77, %v76
    %v111 = vpack.c.bf16 %v79, %v78
    %v112 = vld [vmem:[%s1] sm:$0xf]
    %v113 = vld [vmem:[%s1 + $0x4] sm:$0xf]
    %v114 = vld [vmem:[%s1 + $0x8] sm:$0xf]
    %v115 = vld [vmem:[%s1 + $0xc] sm:$0xf]
    %v116 = vld [vmem:[%s1 + $0x10] sm:$0x3]
    %v117 = vld [vmem:[%s2] sm:$0x1]
    %v119 = vlaneseq
    %v120 = vshrl.u32 %v119, 7
    %v121 = vsub.s32 0, %v120
    %v122 = vrot.slane %v117, %v121
    %v129 = vunpack.c.l.b16 %v112
    %v130 = vunpack.c.l.b16 %v113
    %v131 = vunpack.c.l.b16 %v114
    %v132 = vunpack.c.l.b16 %v115
    %v133 = vunpack.c.l.b16 %v116
    %v134 = vpack.c.b16 %v130, %v129
    %v135 = vpack.c.b16 %v132, %v131
    %v136 = vpack.c.b16 %v133, %v133
    %vm139 = vcmask 293888
    %v141 = vsel %vm139, %v80, 0
    %v144 = vsel %vm139, %v81, 0
    %v147 = vsel %vm139, %v82, 0
    %v150 = vsel %vm139, %v83, 0
    %v153 = vsel %vm139, %v84, 0
    %v156 = vsel %vm139, %v85, 0
    %v159 = vsel %vm139, %v86, 0
    %v162 = vsel %vm139, %v87, 0
    %v165 = vsel %vm139, %v88, 0
    %v168 = vsel %vm139, %v89, 0
    %v171 = vsel %vm139, %v90, 0
    %v174 = vsel %vm139, %v91, 0
    %v177 = vsel %vm139, %v92, 0
    %v180 = vsel %vm139, %v93, 0
    %v183 = vsel %vm139, %v94, 0
    %v186 = vsel %vm139, %v95, 0
    %v189 = vsel %vm139, %v96, 0
    %v192 = vsel %vm139, %v97, 0
    %v195 = vsel %vm139, %v98, 0
    %v198 = vsel %vm139, %v99, 0
    %v201 = vsel %vm139, %v100, 0
    %v204 = vsel %vm139, %v101, 0
    %v207 = vsel %vm139, %v102, 0
    %v210 = vsel %vm139, %v103, 0
    %v213 = vsel %vm139, %v104, 0
    %v216 = vsel %vm139, %v105, 0
    %v219 = vsel %vm139, %v106, 0
    %v222 = vsel %vm139, %v107, 0
    %v225 = vsel %vm139, %v108, 0
    %v228 = vsel %vm139, %v109, 0
    %v231 = vsel %vm139, %v110, 0
    %v234 = vsel %vm139, %v111, 0
    %vm236 = vcmask 1041408
    %v238 = vsel %vm236, %v136, 0
    %240 = vmatprep.subr.bf16.mxu0 0
    %241 = vmatpush1.bf16.msra.mxu0 0
    %242 = vmatprep.subr.bf16.mxu0 0
    %243 = vmatpush1.bf16.msra.mxu0 0
    %244 = vmatprep.subr.bf16.mxu0 0
    %245 = vmatpush1.bf16.msra.mxu0 0
    %246 = vmatprep.subr.bf16.mxu0 0
    %247 = vmatpush1.bf16.msra.mxu0 0
    %248 = vmatprep.subr.bf16.mxu0 0
    %249 = vmatpush1.bf16.msra.mxu0 0
    %250 = vmatprep.subr.bf16.mxu0 0
    %251 = vmatpush1.bf16.msra.mxu0 %v238
    %252 = vmatprep.subr.bf16.mxu0 0
    %253 = vmatpush1.bf16.msra.mxu0 %v135
    %254 = vmatprep.subr.bf16.mxu0 0
    %255 = vmatpush1.bf16.msra.mxu0 %v134
    %256 = vmatprep.subr.bf16.mxu0 0
    %257 = vmatpush2.bf16.msra.mxu0 0
    %258 = vmatprep.subr.bf16.mxu0 0
    %259 = vmatpush2.bf16.msra.mxu0 0
    %260 = vmatprep.subr.bf16.mxu0 0
    %261 = vmatpush2.bf16.msra.mxu0 0
    %262 = vmatprep.subr.bf16.mxu0 0
    %263 = vmatpush2.bf16.msra.mxu0 0
    %264 = vmatprep.subr.bf16.mxu0 0
    %265 = vmatpush2.bf16.msra.mxu0 0
    %266 = vmatprep.subr.bf16.mxu0 0
    %267 = vmatpush2.bf16.msra.mxu0 0
    %268 = vmatprep.subr.bf16.mxu0 0
    %269 = vmatpush2.bf16.msra.mxu0 0
    %270 = vmatprep.subr.bf16.mxu0 0
    %271 = vmatpush2.bf16.msra.mxu0 0
    %272 = vmatprep.mubr.bf16.mxu0 0
    %273 = vmatmul.mubr.bf16.gmra.mxu0 %v141
    %v274 = vpop.f32.mrf.mxu0
    %v275 = vadd.f32 %v122, %v274
    %v276 = vpop.f32.mrf.mxu0
    %v277 = vpop.f32.mrf.mxu0
    %v278 = vadd.f32 %v122, %v277
    %v279 = vpop.f32.mrf.mxu0
    %280 = vmatprep.mubr.bf16.mxu0 0
    %281 = vmatmul.mubr.bf16.gmra.mxu0 %v144
    %v282 = vpop.f32.mrf.mxu0
    %v283 = vadd.f32 %v122, %v282
    %v284 = vpop.f32.mrf.mxu0
    %v285 = vpop.f32.mrf.mxu0
    %v286 = vadd.f32 %v122, %v285
    %v287 = vpop.f32.mrf.mxu0
    %288 = vmatprep.mubr.bf16.mxu0 0
    %289 = vmatmul.mubr.bf16.gmra.mxu0 %v147
    %v290 = vpop.f32.mrf.mxu0
    %v291 = vadd.f32 %v122, %v290
    %v292 = vpop.f32.mrf.mxu0
    %v293 = vpop.f32.mrf.mxu0
    %v294 = vadd.f32 %v122, %v293
    %v295 = vpop.f32.mrf.mxu0
    %296 = vmatprep.mubr.bf16.mxu0 0
    %297 = vmatmul.mubr.bf16.gmra.mxu0 %v150
    %v298 = vpop.f32.mrf.mxu0
    %v299 = vadd.f32 %v122, %v298
    %v300 = vpop.f32.mrf.mxu0
    %v301 = vpop.f32.mrf.mxu0
    %v302 = vadd.f32 %v122, %v301
    %v303 = vpop.f32.mrf.mxu0
    %304 = vmatprep.mubr.bf16.mxu0 0
    %305 = vmatmul.mubr.bf16.gmra.mxu0 %v153
    %v306 = vpop.f32.mrf.mxu0
    %v307 = vadd.f32 %v122, %v306
    %v308 = vpop.f32.mrf.mxu0
    %v309 = vpop.f32.mrf.mxu0
    %v310 = vadd.f32 %v122, %v309
    %v311 = vpop.f32.mrf.mxu0
    %312 = vmatprep.mubr.bf16.mxu0 0
    %313 = vmatmul.mubr.bf16.gmra.mxu0 %v156
    %v314 = vpop.f32.mrf.mxu0
    %v315 = vadd.f32 %v122, %v314
    %v316 = vpop.f32.mrf.mxu0
    %v317 = vpop.f32.mrf.mxu0
    %v318 = vadd.f32 %v122, %v317
    %v319 = vpop.f32.mrf.mxu0
    %320 = vmatprep.mubr.bf16.mxu0 0
    %321 = vmatmul.mubr.bf16.gmra.mxu0 %v159
    %v322 = vpop.f32.mrf.mxu0
    %v323 = vadd.f32 %v122, %v322
    %v324 = vpop.f32.mrf.mxu0
    %v325 = vpop.f32.mrf.mxu0
    %v326 = vadd.f32 %v122, %v325
    %v327 = vpop.f32.mrf.mxu0
    %328 = vmatprep.mubr.bf16.mxu0 0
    %329 = vmatmul.mubr.bf16.gmra.mxu0 %v162
    %v330 = vpop.f32.mrf.mxu0
    %v331 = vadd.f32 %v122, %v330
    %v332 = vpop.f32.mrf.mxu0
    %v333 = vpop.f32.mrf.mxu0
    %v334 = vadd.f32 %v122, %v333
    %v335 = vpop.f32.mrf.mxu0
    %336 = vmatprep.mubr.bf16.mxu0 0
    %337 = vmatmul.mubr.bf16.gmra.mxu0 %v165
    %v338 = vpop.f32.mrf.mxu0
    %v339 = vadd.f32 %v122, %v338
    %v340 = vpop.f32.mrf.mxu0
    %v341 = vpop.f32.mrf.mxu0
    %v342 = vadd.f32 %v122, %v341
    %v343 = vpop.f32.mrf.mxu0
    %344 = vmatprep.mubr.bf16.mxu0 0
    %345 = vmatmul.mubr.bf16.gmra.mxu0 %v168
    %v346 = vpop.f32.mrf.mxu0
    %v347 = vadd.f32 %v122, %v346
    %v348 = vpop.f32.mrf.mxu0
    %v349 = vpop.f32.mrf.mxu0
    %v350 = vadd.f32 %v122, %v349
    %v351 = vpop.f32.mrf.mxu0
    %352 = vmatprep.mubr.bf16.mxu0 0
    %353 = vmatmul.mubr.bf16.gmra.mxu0 %v171
    %v354 = vpop.f32.mrf.mxu0
    %v355 = vadd.f32 %v122, %v354
    %v356 = vpop.f32.mrf.mxu0
    %v357 = vpop.f32.mrf.mxu0
    %v358 = vadd.f32 %v122, %v357
    %v359 = vpop.f32.mrf.mxu0
    %360 = vmatprep.mubr.bf16.mxu0 0
    %361 = vmatmul.mubr.bf16.gmra.mxu0 %v174
    %v362 = vpop.f32.mrf.mxu0
    %v363 = vadd.f32 %v122, %v362
    %v364 = vpop.f32.mrf.mxu0
    %v365 = vpop.f32.mrf.mxu0
    %v366 = vadd.f32 %v122, %v365
    %v367 = vpop.f32.mrf.mxu0
    %368 = vmatprep.mubr.bf16.mxu0 0
    %369 = vmatmul.mubr.bf16.gmra.mxu0 %v177
    %v370 = vpop.f32.mrf.mxu0
    %v371 = vadd.f32 %v122, %v370
    %v372 = vpop.f32.mrf.mxu0
    %v373 = vpop.f32.mrf.mxu0
    %v374 = vadd.f32 %v122, %v373
    %v375 = vpop.f32.mrf.mxu0
    %376 = vmatprep.mubr.bf16.mxu0 0
    %377 = vmatmul.mubr.bf16.gmra.mxu0 %v180
    %v378 = vpop.f32.mrf.mxu0
    %v379 = vadd.f32 %v122, %v378
    %v380 = vpop.f32.mrf.mxu0
    %v381 = vpop.f32.mrf.mxu0
    %v382 = vadd.f32 %v122, %v381
    %v383 = vpop.f32.mrf.mxu0
    %384 = vmatprep.mubr.bf16.mxu0 0
    %385 = vmatmul.mubr.bf16.gmra.mxu0 %v183
    %v386 = vpop.f32.mrf.mxu0
    %v387 = vadd.f32 %v122, %v386
    %v388 = vpop.f32.mrf.mxu0
    %v389 = vpop.f32.mrf.mxu0
    %v390 = vadd.f32 %v122, %v389
    %v391 = vpop.f32.mrf.mxu0
    %392 = vmatprep.mubr.bf16.mxu0 0
    %393 = vmatmul.mubr.bf16.gmra.mxu0 %v186
    %v394 = vpop.f32.mrf.mxu0
    %v395 = vadd.f32 %v122, %v394
    %v396 = vpop.f32.mrf.mxu0
    %v397 = vpop.f32.mrf.mxu0
    %v398 = vadd.f32 %v122, %v397
    %v399 = vpop.f32.mrf.mxu0
    %400 = vmatprep.mubr.bf16.mxu0 0
    %401 = vmatmul.mubr.bf16.gmra.mxu0 %v189
    %v402 = vpop.f32.mrf.mxu0
    %v403 = vadd.f32 %v122, %v402
    %v404 = vpop.f32.mrf.mxu0
    %v405 = vpop.f32.mrf.mxu0
    %v406 = vadd.f32 %v122, %v405
    %v407 = vpop.f32.mrf.mxu0
    %408 = vmatprep.mubr.bf16.mxu0 0
    %409 = vmatmul.mubr.bf16.gmra.mxu0 %v192
    %v410 = vpop.f32.mrf.mxu0
    %v411 = vadd.f32 %v122, %v410
    %v412 = vpop.f32.mrf.mxu0
    %v413 = vpop.f32.mrf.mxu0
    %v414 = vadd.f32 %v122, %v413
    %v415 = vpop.f32.mrf.mxu0
    %416 = vmatprep.mubr.bf16.mxu0 0
    %417 = vmatmul.mubr.bf16.gmra.mxu0 %v195
    %v418 = vpop.f32.mrf.mxu0
    %v419 = vadd.f32 %v122, %v418
    %v420 = vpop.f32.mrf.mxu0
    %v421 = vpop.f32.mrf.mxu0
    %v422 = vadd.f32 %v122, %v421
    %v423 = vpop.f32.mrf.mxu0
    %424 = vmatprep.mubr.bf16.mxu0 0
    %425 = vmatmul.mubr.bf16.gmra.mxu0 %v198
    %v426 = vpop.f32.mrf.mxu0
    %v427 = vadd.f32 %v122, %v426
    %v428 = vpop.f32.mrf.mxu0
    %v429 = vpop.f32.mrf.mxu0
    %v430 = vadd.f32 %v122, %v429
    %v431 = vpop.f32.mrf.mxu0
    %432 = vmatprep.mubr.bf16.mxu0 0
    %433 = vmatmul.mubr.bf16.gmra.mxu0 %v201
    %v434 = vpop.f32.mrf.mxu0
    %v435 = vadd.f32 %v122, %v434
    %v436 = vpop.f32.mrf.mxu0
    %v437 = vpop.f32.mrf.mxu0
    %v438 = vadd.f32 %v122, %v437
    %v439 = vpop.f32.mrf.mxu0
    %440 = vmatprep.mubr.bf16.mxu0 0
    %441 = vmatmul.mubr.bf16.gmra.mxu0 %v204
    %v442 = vpop.f32.mrf.mxu0
    %v443 = vadd.f32 %v122, %v442
    %v444 = vpop.f32.mrf.mxu0
    %v445 = vpop.f32.mrf.mxu0
    %v446 = vadd.f32 %v122, %v445
    %v447 = vpop.f32.mrf.mxu0
    %448 = vmatprep.mubr.bf16.mxu0 0
    %449 = vmatmul.mubr.bf16.gmra.mxu0 %v207
    %v450 = vpop.f32.mrf.mxu0
    %v451 = vadd.f32 %v122, %v450
    %v452 = vpop.f32.mrf.mxu0
    %v453 = vpop.f32.mrf.mxu0
    %v454 = vadd.f32 %v122, %v453
    %v455 = vpop.f32.mrf.mxu0
    %456 = vmatprep.mubr.bf16.mxu0 0
    %457 = vmatmul.mubr.bf16.gmra.mxu0 %v210
    %v458 = vpop.f32.mrf.mxu0
    %v459 = vadd.f32 %v122, %v458
    %v460 = vpop.f32.mrf.mxu0
    %v461 = vpop.f32.mrf.mxu0
    %v462 = vadd.f32 %v122, %v461
    %v463 = vpop.f32.mrf.mxu0
    %464 = vmatprep.mubr.bf16.mxu0 0
    %465 = vmatmul.mubr.bf16.gmra.mxu0 %v213
    %v466 = vpop.f32.mrf.mxu0
    %v467 = vadd.f32 %v122, %v466
    %v468 = vpop.f32.mrf.mxu0
    %v469 = vpop.f32.mrf.mxu0
    %v470 = vadd.f32 %v122, %v469
    %v471 = vpop.f32.mrf.mxu0
    %472 = vmatprep.mubr.bf16.mxu0 0
    %473 = vmatmul.mubr.bf16.gmra.mxu0 %v216
    %v474 = vpop.f32.mrf.mxu0
    %v475 = vadd.f32 %v122, %v474
    %v476 = vpop.f32.mrf.mxu0
    %v477 = vpop.f32.mrf.mxu0
    %v478 = vadd.f32 %v122, %v477
    %v479 = vpop.f32.mrf.mxu0
    %480 = vmatprep.mubr.bf16.mxu0 0
    %481 = vmatmul.mubr.bf16.gmra.mxu0 %v219
    %v482 = vpop.f32.mrf.mxu0
    %v483 = vadd.f32 %v122, %v482
    %v484 = vpop.f32.mrf.mxu0
    %v485 = vpop.f32.mrf.mxu0
    %v486 = vadd.f32 %v122, %v485
    %v487 = vpop.f32.mrf.mxu0
    %488 = vmatprep.mubr.bf16.mxu0 0
    %489 = vmatmul.mubr.bf16.gmra.mxu0 %v222
    %v490 = vpop.f32.mrf.mxu0
    %v491 = vadd.f32 %v122, %v490
    %v492 = vpop.f32.mrf.mxu0
    %v493 = vpop.f32.mrf.mxu0
    %v494 = vadd.f32 %v122, %v493
    %v495 = vpop.f32.mrf.mxu0
    %496 = vmatprep.mubr.bf16.mxu0 0
    %497 = vmatmul.mubr.bf16.gmra.mxu0 %v225
    %v498 = vpop.f32.mrf.mxu0
    %v499 = vadd.f32 %v122, %v498
    %v500 = vpop.f32.mrf.mxu0
    %v501 = vpop.f32.mrf.mxu0
    %v502 = vadd.f32 %v122, %v501
    %v503 = vpop.f32.mrf.mxu0
    %504 = vmatprep.mubr.bf16.mxu0 0
    %505 = vmatmul.mubr.bf16.gmra.mxu0 %v228
    %v506 = vpop.f32.mrf.mxu0
    %v507 = vadd.f32 %v122, %v506
    %v508 = vpop.f32.mrf.mxu0
    %v509 = vpop.f32.mrf.mxu0
    %v510 = vadd.f32 %v122, %v509
    %v511 = vpop.f32.mrf.mxu0
    %512 = vmatprep.mubr.bf16.mxu0 0
    %513 = vmatmul.mubr.bf16.gmra.mxu0 %v231
    %v514 = vpop.f32.mrf.mxu0
    %v515 = vadd.f32 %v122, %v514
    %v516 = vpop.f32.mrf.mxu0
    %v517 = vpop.f32.mrf.mxu0
    %v518 = vadd.f32 %v122, %v517
    %v519 = vpop.f32.mrf.mxu0
    %520 = vmatprep.mubr.bf16.mxu0 0
    %521 = vmatmul.mubr.bf16.gmra.mxu0 %v234
    %v522 = vpop.f32.mrf.mxu0
    %v523 = vadd.f32 %v122, %v522
    %v524 = vpop.f32.mrf.mxu0
    %v525 = vpop.f32.mrf.mxu0
    %v526 = vadd.f32 %v122, %v525
    %v527 = vpop.f32.mrf.mxu0
    %528 = vdwg.mxu0
    %529 = vst [vmem:[#allocation2] sm:$0xff] %v275
    %530 = vst [vmem:[#allocation2 + $0x8] sm:$0xff] %v278
    %531 = vst [vmem:[#allocation2 + $0x10] sm:$0xff] %v283
    %532 = vst [vmem:[#allocation2 + $0x18] sm:$0xff] %v286
    %533 = vst [vmem:[#allocation2 + $0x20] sm:$0xff] %v291
    %534 = vst [vmem:[#allocation2 + $0x28] sm:$0xff] %v294
    %535 = vst [vmem:[#allocation2 + $0x30] sm:$0xff] %v299
    %536 = vst [vmem:[#allocation2 + $0x38] sm:$0xff] %v302
    %537 = vst [vmem:[#allocation2 + $0x40] sm:$0xff] %v307
    %538 = vst [vmem:[#allocation2 + $0x48] sm:$0xff] %v310
    %539 = vst [vmem:[#allocation2 + $0x50] sm:$0xff] %v315
    %540 = vst [vmem:[#allocation2 + $0x58] sm:$0xff] %v318
    %541 = vst [vmem:[#allocation2 + $0x60] sm:$0xff] %v323
    %542 = vst [vmem:[#allocation2 + $0x68] sm:$0xff] %v326
    %543 = vst [vmem:[#allocation2 + $0x70] sm:$0xff] %v331
    %544 = vst [vmem:[#allocation2 + $0x78] sm:$0xff] %v334
    %545 = vst [vmem:[#allocation2 + $0x80] sm:$0xff] %v339
    %546 = vst [vmem:[#allocation2 + $0x88] sm:$0xff] %v342
    %547 = vst [vmem:[#allocation2 + $0x90] sm:$0xff] %v347
    %548 = vst [vmem:[#allocation2 + $0x98] sm:$0xff] %v350
    %549 = vst [vmem:[#allocation2 + $0xa0] sm:$0xff] %v355
    %550 = vst [vmem:[#allocation2 + $0xa8] sm:$0xff] %v358
    %551 = vst [vmem:[#allocation2 + $0xb0] sm:$0xff] %v363
    %552 = vst [vmem:[#allocation2 + $0xb8] sm:$0xff] %v366
    %553 = vst [vmem:[#allocation2 + $0xc0] sm:$0xff] %v371
    %554 = vst [vmem:[#allocation2 + $0xc8] sm:$0xff] %v374
    %555 = vst [vmem:[#allocation2 + $0xd0] sm:$0xff] %v379
    %556 = vst [vmem:[#allocation2 + $0xd8] sm:$0xff] %v382
    %557 = vst [vmem:[#allocation2 + $0xe0] sm:$0xff] %v387
    %558 = vst [vmem:[#allocation2 + $0xe8] sm:$0xff] %v390
    %559 = vst [vmem:[#allocation2 + $0xf0] sm:$0xff] %v395
    %560 = vst [vmem:[#allocation2 + $0xf8] sm:$0xff] %v398
    %561 = vst [vmem:[#allocation2 + $0x100] sm:$0xff] %v403
    %562 = vst [vmem:[#allocation2 + $0x108] sm:$0xff] %v406
    %563 = vst [vmem:[#allocation2 + $0x110] sm:$0xff] %v411
    %564 = vst [vmem:[#allocation2 + $0x118] sm:$0xff] %v414
    %565 = vst [vmem:[#allocation2 + $0x120] sm:$0xff] %v419
    %566 = vst [vmem:[#allocation2 + $0x128] sm:$0xff] %v422
    %567 = vst [vmem:[#allocation2 + $0x130] sm:$0xff] %v427
    %568 = vst [vmem:[#allocation2 + $0x138] sm:$0xff] %v430
    %569 = vst [vmem:[#allocation2 + $0x140] sm:$0xff] %v435
    %570 = vst [vmem:[#allocation2 + $0x148] sm:$0xff] %v438
    %571 = vst [vmem:[#allocation2 + $0x150] sm:$0xff] %v443
    %572 = vst [vmem:[#allocation2 + $0x158] sm:$0xff] %v446
    %573 = vst [vmem:[#allocation2 + $0x160] sm:$0xff] %v451
    %574 = vst [vmem:[#allocation2 + $0x168] sm:$0xff] %v454
    %575 = vst [vmem:[#allocation2 + $0x170] sm:$0xff] %v459
    %576 = vst [vmem:[#allocation2 + $0x178] sm:$0xff] %v462
    %577 = vst [vmem:[#allocation2 + $0x180] sm:$0xff] %v467
    %578 = vst [vmem:[#allocation2 + $0x188] sm:$0xff] %v470
    %579 = vst [vmem:[#allocation2 + $0x190] sm:$0xff] %v475
    %580 = vst [vmem:[#allocation2 + $0x198] sm:$0xff] %v478
    %581 = vst [vmem:[#allocation2 + $0x1a0] sm:$0xff] %v483
    %582 = vst [vmem:[#allocation2 + $0x1a8] sm:$0xff] %v486
    %583 = vst [vmem:[#allocation2 + $0x1b0] sm:$0xff] %v491
    %584 = vst [vmem:[#allocation2 + $0x1b8] sm:$0xff] %v494
    %585 = vst [vmem:[#allocation2 + $0x1c0] sm:$0xff] %v499
    %586 = vst [vmem:[#allocation2 + $0x1c8] sm:$0xff] %v502
    %587 = vst [vmem:[#allocation2 + $0x1d0] sm:$0xff] %v507
    %588 = vst [vmem:[#allocation2 + $0x1d8] sm:$0xff] %v510
    %589 = vst [vmem:[#allocation2 + $0x1e0] sm:$0xff] %v515
    %590 = vst [vmem:[#allocation2 + $0x1e8] sm:$0xff] %v518
    %591 = vst [vmem:[#allocation2 + $0x1f0] sm:$0xff] %v523
    %592 = vst [vmem:[#allocation2 + $0x1f8] sm:$0xff] %v526
    // Predicated region
    $region14: #{tpu_custom_call.1} parent=1 // pred_check
      _
    $region15: #{tpu_custom_call.1} parent=1 // pred_check_branch
      %594 = sbr.rel (0) target = $region17
    $region16: #{tpu_custom_call.1} parent=1 // pred_region
      %s596 = ssub.s32 8192, 8192
      %597 = vsyncadd [#allocation3], %s596
      %s598 = sshll.u32 [#allocation2], 4
      %s599 = int_to_ptr.vmem [resolvable:$true] %s598
      %604 = dma.vmem_to_hbm [thread:$0]  %s599, 8192, %s3, [#allocation3], 128, 128, 8
    $region17: #{tpu_custom_call.1} parent=1 // pred_fallthru
      _
    // Predicated region
    $region18: #{tpu_custom_call.1} parent=1 // pred_check
      _
    $region19: #{tpu_custom_call.1} parent=1 // pred_check_branch
      %606 = sbr.rel (0) target = $region21
    $region20: #{tpu_custom_call.1} parent=1 // pred_region
      %607 = dma.done [#allocation3], 8192
    $region21: #{tpu_custom_call.1} parent=1 // pred_fallthru
      _
    %608 = vsyncpa [#allocation3], 1

</llo_original>
